<compile_context>
chip_gen: v6e
topology: v6e:2x2x1
jax: 0.10.0
libtpu: 0.0.40
codegen_flags: <defaults>
</compile_context>

<pallas_src>
import math

import jax
import jax.numpy as jnp
from jax.experimental import pallas as pl
from jax.experimental.pallas import tpu as pltpu

CLS_ID = 101
PAD_ID = 0
SEP_ID = 102
SOFTMAX_THRESHOLD = 0.001


def _bert_guide_head_kernel(mask_src_ref, mask_tgt_ref, h_src_ref, h_tgt_ref, out_ref):
    # mask_src_ref: (1, S_src, 1) f32 additive mask (-1e4 on special src tokens)
    # mask_tgt_ref: (1, 1, S_tgt) f32 additive mask (-1e4 on special tgt tokens)
    # h_src_ref:    (1, S_src, H)  bf16 (or f32)
    # h_tgt_ref:    (1, S_tgt, H)  bf16 (or f32)
    # out_ref:      (1, S_src, S_tgt) int8 (0/1)
    q_src = h_src_ref[0]                      # (S_src, H)
    q_tgt = h_tgt_ref[0]                      # (S_tgt, H)

    # scores[i, j] = q_src[i] . q_tgt[j] -- contract the last dims directly
    # (standard NT attention contraction; MXU accumulates in f32).
    scores = jax.lax.dot_general(
        q_src, q_tgt, (((1,), (1,)), ((), ())),
        preferred_element_type=jnp.float32)   # (S_src, S_tgt) f32

    # Single masked score matrix.  Adding BOTH additive masks to one matrix is
    # exact for the final align matrix:
    #  * unmasked (i, j): both mask terms are exactly 0.0 -> identical numerics
    #  * the mask that is constant along a softmax axis cancels inside that
    #    softmax; the other mask drives the probability (far) below threshold.
    # Relies on |scores| << 1e4 (true for BERT dot products).
    sm = scores + mask_tgt_ref[0]             # (1, S_tgt) broadcast over rows
    sm = sm + mask_src_ref[0]                 # (S_src, 1) broadcast over cols

    log_thr = jnp.float32(math.log(SOFTMAX_THRESHOLD))

    # Log-domain thresholds.  rowsum/colsum >= 1 (the max term contributes
    # exp(0) = 1), so the logs are always finite.
    m_s = jnp.max(sm, axis=-1, keepdims=True)                               # (S_src, 1)
    lse_s = m_s + jnp.log(jnp.sum(jnp.exp(sm - m_s), axis=-1, keepdims=True))
    m_t = jnp.max(sm, axis=0, keepdims=True)                                # (1, S_tgt)
    lse_t = m_t + jnp.log(jnp.sum(jnp.exp(sm - m_t), axis=0, keepdims=True))

    # (p_src > thr) & (p_tgt > thr)
    #   <=> sm > log(thr) + lse_s  AND  sm > log(thr) + lse_t
    #   <=> sm > log(thr) + max(lse_s, lse_t)        (single compare pass)
    thresh = jnp.maximum(lse_s, lse_t) + log_thr      # broadcasts to (S_src, S_tgt)
    out_ref[0] = (sm > thresh).astype(jnp.int8)


def _pad_axis(x, axis, multiple, value):
    size = x.shape[axis]
    pad = (-size) % multiple
    if pad == 0:
        return x
    widths = [(0, 0)] * x.ndim
    widths[axis] = (0, pad)
    return jnp.pad(x, widths, constant_values=value)


def _additive_special_mask(ids):
    special = (ids == PAD_ID) | (ids == CLS_ID) | (ids == SEP_ID)
    return jnp.where(special, jnp.float32(-10000.0), jnp.float32(0.0))


def _pick_vmem_limit(est_bytes):
    """Generation-aware VMEM limit: enough for our blocks, <= 3/4 of physical."""
    try:
        cap = pltpu.get_tpu_info().vmem_capacity_bytes
    except Exception:
        cap = 64 * 1024 * 1024          # conservative (v7x per-TC)
    hi = (cap * 3) // 4
    lo = min(32 * 1024 * 1024, hi)
    return int(min(hi, max(lo, 2 * est_bytes)))


def bert_guide_head(hidden_states_src, hidden_states_tgt, inputs_src, inputs_tgt,
                    *, compute_dtype=jnp.bfloat16, return_bool=True):
    """Returns align_matrix of shape (B, 1, S_src, S_tgt).

    return_bool=True matches the PyTorch module (bool dtype); return_bool=False
    returns the kernel's int8 0/1 matrix directly and skips one SxS HBM pass.
    """
    B, S_src, H = hidden_states_src.shape
    _, S_tgt, _ = hidden_states_tgt.shape

    # Cast hidden states to bf16 for DMA + MXU (accumulation stays f32).
    if compute_dtype is not None and hidden_states_src.dtype != compute_dtype:
        hidden_states_src = hidden_states_src.astype(compute_dtype)
        hidden_states_tgt = hidden_states_tgt.astype(compute_dtype)

    # Pad tgt axis (output lanes) to 128 and src axis (int8 output sublanes)
    # to 32.  Padded positions get PAD ids -> masked -> exact.
    h_src = _pad_axis(hidden_states_src, 1, 32, 0)
    h_tgt = _pad_axis(hidden_states_tgt, 1, 128, 0)
    ids_src = _pad_axis(inputs_src.astype(jnp.int32), 1, 32, PAD_ID)
    ids_tgt = _pad_axis(inputs_tgt.astype(jnp.int32), 1, 128, PAD_ID)
    S_src_p = h_src.shape[1]
    S_tgt_p = h_tgt.shape[1]

    # Tiny additive masks computed outside the kernel (token ids never enter it).
    add_src = _additive_special_mask(ids_src).reshape(B, S_src_p, 1)   # row mask
    add_tgt = _additive_special_mask(ids_tgt).reshape(B, 1, S_tgt_p)   # col mask

    in_bytes = jnp.dtype(h_src.dtype).itemsize
    est = (2 * (S_src_p + S_tgt_p) * H * in_bytes      # double-buffered hidden states
           + 2 * (S_src_p + S_tgt_p) * 4               # double-buffered masks
           + 2 * S_src_p * S_tgt_p                     # double-buffered int8 output
           + 4 * S_src_p * S_tgt_p * 4)                # in-kernel f32 SxS temporaries
    vmem_limit = _pick_vmem_limit(est)

    out = pl.pallas_call(
        _bert_guide_head_kernel,
        out_shape=jax.ShapeDtypeStruct((B, S_src_p, S_tgt_p), jnp.int8),
        grid_spec=pltpu.PrefetchScalarGridSpec(
            num_scalar_prefetch=0,
            grid=(B,),
            in_specs=[
                pl.BlockSpec((1, S_src_p, 1), lambda b: (b, 0, 0)),
                pl.BlockSpec((1, 1, S_tgt_p), lambda b: (b, 0, 0)),
                pl.BlockSpec((1, S_src_p, H), lambda b: (b, 0, 0)),
                pl.BlockSpec((1, S_tgt_p, H), lambda b: (b, 0, 0)),
            ],
            out_specs=pl.BlockSpec((1, S_src_p, S_tgt_p), lambda b: (b, 0, 0)),
        ),
        compiler_params=pltpu.CompilerParams(
            dimension_semantics=("parallel",),
            vmem_limit_bytes=vmem_limit,
        ),
    )(add_src, add_tgt, h_src, h_tgt)

    # Only slice when padding actually happened; bool cast is optional so the
    # hot path does not pay an extra full SxS HBM read+write.
    if (S_src_p, S_tgt_p) != (S_src, S_tgt):
        out = out[:, :S_src, :S_tgt]
    align = out[:, None, :, :]
    if return_bool:
        align = align.astype(jnp.bool_)
    return align


def _reference(h_src, h_tgt, ids_src, ids_tgt):
    """Pure-JAX reference mirroring the PyTorch forward (default path), f32."""
    spec_src = ((ids_src == PAD_ID) | (ids_src == CLS_ID) | (ids_src == SEP_ID)).astype(jnp.float32)
    spec_tgt = ((ids_tgt == PAD_ID) | (ids_tgt == CLS_ID) | (ids_tgt == SEP_ID)).astype(jnp.float32)
    mask_src = (1.0 - (1.0 - spec_src))[:, None, None, :] * -10000.0   # (B,1,1,S_src)
    mask_tgt = (1.0 - (1.0 - spec_tgt))[:, None, None, :] * -10000.0   # (B,1,1,S_tgt)
    q_src = h_src[:, None, :, :]
    q_tgt = h_tgt[:, None, :, :]
    scores = jnp.einsum('bhqd,bhkd->bhqk', q_src, q_tgt,
                        precision=jax.lax.Precision.HIGHEST)
    s_src = scores + mask_tgt
    s_tgt = scores + jnp.swapaxes(mask_src, -1, -2)
    p_src = jax.nn.softmax(s_src, axis=-1)
    p_tgt = jax.nn.softmax(s_tgt, axis=-2)
    return (p_src > SOFTMAX_THRESHOLD) & (p_tgt > SOFTMAX_THRESHOLD)


if __name__ == "__main__":
    B, S, H = 2, 8, 32
    key = jax.random.PRNGKey(0)
    k1, k2 = jax.random.split(key)
    hidden_src = jax.random.normal(k1, (B, S, H), dtype=jnp.float32)
    hidden_tgt = jax.random.normal(k2, (B, S, H), dtype=jnp.float32)
    # deterministic token ids: [CLS] w w w [SEP] PAD...
    inputs_src = jnp.array([[101, 5, 6, 7, 102, 0, 0, 0],
                            [101, 11, 12, 13, 14, 102, 0, 0]], dtype=jnp.int32)
    inputs_tgt = jnp.array([[101, 21, 22, 102, 0, 0, 0, 0],
                            [101, 31, 32, 33, 102, 0, 0, 0]], dtype=jnp.int32)

    align = bert_guide_head(hidden_src, hidden_tgt, inputs_src, inputs_tgt)
    align = jax.block_until_ready(align)

    # Reference uses the same bf16-quantised hidden states the kernel consumes
    # (wrapper casts to bf16 for DMA/MXU); all reference math is f32 like torch.
    hsq = hidden_src.astype(jnp.bfloat16).astype(jnp.float32)
    htq = hidden_tgt.astype(jnp.bfloat16).astype(jnp.float32)
    ref = _reference(hsq, htq, inputs_src, inputs_tgt)

    assert align.shape == (B, 1, S, S) and align.dtype == jnp.bool_
    assert bool(jnp.array_equal(align, ref))

    print("KERNEL_OK")
</pallas_src>

<mosaic_0001>
module attributes {stable_mosaic.version = 11 : i64} {
  func.func @_bert_guide_head_kernel(%arg0: i32, %arg1: memref<1x32x1xf32, #tpu.memory_space<vmem>>, %arg2: memref<1x1x128xf32, #tpu.memory_space<vmem>>, %arg3: memref<1x32x32xbf16, #tpu.memory_space<vmem>>, %arg4: memref<1x128x32xbf16, #tpu.memory_space<vmem>>, %arg5: memref<1x32x128xi8, #tpu.memory_space<vmem>>) attributes {dimension_semantics = [#tpu.dimension_semantics<parallel>], iteration_bounds = array<i64: 2>, scalar_prefetch = 0 : i64, scratch_operands = 0 : i64, tpu.core_type = #tpu.core_type<tc>, window_params = [{transform_indices = @transform_0, window_bounds = array<i64: 1, 32, 1>}, {transform_indices = @transform_1, window_bounds = array<i64: 1, 1, 128>}, {transform_indices = @transform_2, window_bounds = array<i64: 1, 32, 32>}, {transform_indices = @transform_3, window_bounds = array<i64: 1, 128, 32>}, {transform_indices = @transform_4, window_bounds = array<i64: 1, 32, 128>}]} {
    %c0 = arith.constant 0 : index
    %c0_0 = arith.constant 0 : index
    %c0_1 = arith.constant 0 : index
    %0 = vector.load %arg3[%c0, %c0_0, %c0_1] : memref<1x32x32xbf16, #tpu.memory_space<vmem>>, vector<1x32x32xbf16>
    %1 = vector.shape_cast %0 : vector<1x32x32xbf16> to vector<32x32xbf16>
    %c0_2 = arith.constant 0 : index
    %c0_3 = arith.constant 0 : index
    %c0_4 = arith.constant 0 : index
    %2 = vector.load %arg4[%c0_2, %c0_3, %c0_4] : memref<1x128x32xbf16, #tpu.memory_space<vmem>>, vector<1x128x32xbf16>
    %3 = vector.shape_cast %2 : vector<1x128x32xbf16> to vector<128x32xbf16>
    %cst = arith.constant dense<0.000000e+00> : vector<32x128xf32>
    %4 = tpu.matmul %1, %3, %cst {dimension_numbers = #tpu.dot_dimension_numbers<[1], [1], [0], [0], [0, 0, 1, 0], [], []>} : vector<32x32xbf16>, vector<128x32xbf16>, vector<32x128xf32> -> vector<32x128xf32>
    %c0_5 = arith.constant 0 : index
    %c0_6 = arith.constant 0 : index
    %c0_7 = arith.constant 0 : index
    %5 = vector.load %arg2[%c0_5, %c0_6, %c0_7] : memref<1x1x128xf32, #tpu.memory_space<vmem>>, vector<1x1x128xf32>
    %6 = vector.shape_cast %5 : vector<1x1x128xf32> to vector<1x128xf32>
    %7 = vector.broadcast %6 : vector<1x128xf32> to vector<32x128xf32>
    %8 = arith.addf %4, %7 : vector<32x128xf32>
    %c0_8 = arith.constant 0 : index
    %c0_9 = arith.constant 0 : index
    %c0_10 = arith.constant 0 : index
    %9 = vector.load %arg1[%c0_8, %c0_9, %c0_10] : memref<1x32x1xf32, #tpu.memory_space<vmem>>, vector<1x32x1xf32>
    %10 = vector.shape_cast %9 : vector<1x32x1xf32> to vector<32x1xf32>
    %11 = vector.broadcast %10 : vector<32x1xf32> to vector<32x128xf32>
    %12 = arith.addf %8, %11 : vector<32x128xf32>
    %cst_11 = arith.constant dense<0xFF800000> : vector<32xf32>
    %13 = vector.multi_reduction <maximumf>, %12, %cst_11 [1] : vector<32x128xf32> to vector<32xf32>
    %14 = vector.shape_cast %13 : vector<32xf32> to vector<32x1xf32>
    %15 = vector.broadcast %14 : vector<32x1xf32> to vector<32x128xf32>
    %16 = arith.subf %12, %15 : vector<32x128xf32>
    %17 = math.exp %16 : vector<32x128xf32>
    %cst_12 = arith.constant dense<0.000000e+00> : vector<32xf32>
    %18 = vector.multi_reduction <add>, %17, %cst_12 [1] : vector<32x128xf32> to vector<32xf32>
    %19 = vector.shape_cast %18 : vector<32xf32> to vector<32x1xf32>
    %20 = math.log %19 : vector<32x1xf32>
    %21 = arith.addf %14, %20 : vector<32x1xf32>
    %cst_13 = arith.constant dense<0xFF800000> : vector<128xf32>
    %22 = vector.multi_reduction <maximumf>, %12, %cst_13 [0] : vector<32x128xf32> to vector<128xf32>
    %23 = vector.shape_cast %22 : vector<128xf32> to vector<1x128xf32>
    %24 = vector.broadcast %23 : vector<1x128xf32> to vector<32x128xf32>
    %25 = arith.subf %12, %24 : vector<32x128xf32>
    %26 = math.exp %25 : vector<32x128xf32>
    %cst_14 = arith.constant dense<0.000000e+00> : vector<128xf32>
    %27 = vector.multi_reduction <add>, %26, %cst_14 [0] : vector<32x128xf32> to vector<128xf32>
    %28 = vector.shape_cast %27 : vector<128xf32> to vector<1x128xf32>
    %29 = math.log %28 : vector<1x128xf32>
    %30 = arith.addf %23, %29 : vector<1x128xf32>
    %31 = vector.broadcast %21 : vector<32x1xf32> to vector<32x128xf32>
    %32 = vector.broadcast %30 : vector<1x128xf32> to vector<32x128xf32>
    %33 = arith.maximumf %31, %32 : vector<32x128xf32>
    %cst_15 = arith.constant -6.90775537 : f32
    %34 = vector.broadcast %cst_15 : f32 to vector<32x128xf32>
    %35 = arith.addf %33, %34 : vector<32x128xf32>
    %36 = arith.cmpf ogt, %12, %35 : vector<32x128xf32>
    %37 = arith.extui %36 : vector<32x128xi1> to vector<32x128xi8>
    %c0_16 = arith.constant 0 : index
    %c0_17 = arith.constant 0 : index
    %c0_18 = arith.constant 0 : index
    %38 = vector.load %arg5[%c0_16, %c0_17, %c0_18] : memref<1x32x128xi8, #tpu.memory_space<vmem>>, vector<1x32x128xi8>
    %39 = vector.shape_cast %38 : vector<1x32x128xi8> to vector<32x128xi8>
    %40 = vector.shape_cast %37 : vector<32x128xi8> to vector<1x32x128xi8>
    tpu.vector_store %arg5[%c0_16, %c0_17, %c0_18], %40 {strides = array<i32>} : memref<1x32x128xi8, #tpu.memory_space<vmem>>, vector<1x32x128xi8>,
    return
  }
  func.func @transform_0(%arg0: i32) -> (i32, i32, i32) {
    %c0_i32 = arith.constant 0 : i32
    %c0_i32_0 = arith.constant 0 : i32
    %c0_i32_1 = arith.constant 0 : i32
    return %arg0, %c0_i32, %c0_i32_0 : i32, i32, i32
  }
  func.func @transform_1(%arg0: i32) -> (i32, i32, i32) {
    %c0_i32 = arith.constant 0 : i32
    %c0_i32_0 = arith.constant 0 : i32
    %c0_i32_1 = arith.constant 0 : i32
    return %arg0, %c0_i32, %c0_i32_0 : i32, i32, i32
  }
  func.func @transform_2(%arg0: i32) -> (i32, i32, i32) {
    %c0_i32 = arith.constant 0 : i32
    %c0_i32_0 = arith.constant 0 : i32
    %c0_i32_1 = arith.constant 0 : i32
    return %arg0, %c0_i32, %c0_i32_0 : i32, i32, i32
  }
  func.func @transform_3(%arg0: i32) -> (i32, i32, i32) {
    %c0_i32 = arith.constant 0 : i32
    %c0_i32_0 = arith.constant 0 : i32
    %c0_i32_1 = arith.constant 0 : i32
    return %arg0, %c0_i32, %c0_i32_0 : i32, i32, i32
  }
  func.func @transform_4(%arg0: i32) -> (i32, i32, i32) {
    %c0_i32 = arith.constant 0 : i32
    %c0_i32_0 = arith.constant 0 : i32
    %c0_i32_1 = arith.constant 0 : i32
    return %arg0, %c0_i32, %c0_i32_0 : i32, i32, i32
  }
}

</mosaic_0001>

<llo_original>
// kernel: tpu_custom_call.1
$region0: #{tpu_custom_call.1}
  #allocation0 [shape = 'u32[]', space=smem, size = 0x4, offset = 0x4, fixed_abs, tag = 'smem constant byte address 0x4 - core index']
  #allocation1 [shape = 'u32[144,128]{1,0:T(1,128)}', space=vmem, size = 0x12000, scoped, tag = 'internal scratch']
  %s0 = inlined_call_operand.vmem [shape: f32[2,32,1], index: 0, kind: input, shape index: {}]
  %s1 = inlined_call_operand.vmem [shape: f32[2,1,128], index: 1, kind: input, shape index: {}]
  %s2 = inlined_call_operand.vmem [shape: bf16[2,32,32], index: 2, kind: input, shape index: {}]
  %s3 = inlined_call_operand.vmem [shape: bf16[2,128,32], index: 3, kind: input, shape index: {}]
  %s4 = inlined_call_operand.hbm [shape: s8[2,32,128], index: 4, kind: output, shape index: {}]
  %s5 = sld [smem:[#allocation0]]
  $region49: #{tpu_custom_call.1} parent=0
    _
  %s7 = ssub.s32 1, %s5
  %s8 = scalar_select 0, %s7, %s5
  $region1: #{tpu_custom_call.1} parent=0
    #allocation2 [shape = 'u8[8192]{0}', space=vmem, size = 0x2000, scoped, tag = 'output window, operand 0']
    #allocation3 [shape = 's32[2]{0}', space=sflag, size = 0x8, scoped, tag = 'scoped memory for tpu_custom_call.1']
    %9 = vsyncpa [#allocation3], 0
    %s10 = scalar_lea.sflag [#allocation3], 1
    %11 = vsyncpa %s10, 0
    loop: start=0, step=1, limit=4
    $region2: #{tpu_custom_call.1} parent=1 // loop_pre_header
      _
    $region3: #{tpu_custom_call.1} parent=1 // loop_header
      %s13 = sphi 0, %s17
      %p14 = scmp.ge.s32.totalorder %s13, 4
      %s23 = sphi 0, %s25
      %s26 = sphi 0, %s23
      %s27 = sphi 0, %s26
      %s43 = sphi 0, %s27
      %s49 = sphi 0, %s51
      %s52 = sphi 0, %s49
      %s53 = sphi 0, %s52
      %s69 = sphi 0, %s53
      %s75 = sphi 0, %s77
      %s78 = sphi 0, %s75
      %s79 = sphi 0, %s78
      %s95 = sphi 0, %s79
      %s101 = sphi 0, %s103
      %s104 = sphi 0, %s101
      %s105 = sphi 0, %s104
      %s121 = sphi 0, %s105
      %s127 = sphi 0, %s129
      %s130 = sphi 0, %s127
      %s131 = sphi 0, %s130
      %s147 = sphi 0, %s131
    $region4: #{tpu_custom_call.1} parent=1 // loop_header_branch
      %16 = sbr.rel (%p14) target = $region8
    $region5: #{tpu_custom_call.1} parent=1 // loop_body
      %s18 = ssub.s32 %s13, 1
      %s19 = ssub.s32 %s13, 2
      %s20 = sadd.s32 %s13, 1
      %s21 = ssub.s32 %s13, %s20
      %p22 = scmp.eq.s32.totalorder %s21, 0
      %s24 = sadd.s32 %s23, 1
      %s25 = scalar_select %p22, %s23, %s24
      %p28 = pneg %p22
      %p29 = scmp.eq.s32.totalorder %s13, 1
      %p30 = por %p28, %p29
      %p31 = scmp.ne.s32.totalorder %s23, %s26
      %p32 = scmp.eq.s32.totalorder %s13, 0
      %p33 = por %p31, %p32
      %p34 = scmp.ne.s32.totalorder %s23, %s26
      %p35 = scmp.eq.s32.totalorder %s18, 1
      %p36 = por %p34, %p35
      %p37 = scmp.ne.s32.totalorder %s26, %s27
      %p38 = scmp.eq.s32.totalorder %s18, 0
      %p39 = por %p37, %p38
      %p40 = scmp.ne.s32.totalorder %s26, %s27
      %p41 = scmp.eq.s32.totalorder %s19, 1
      %p42 = por %p40, %p41
      %p44 = scmp.ne.s32.totalorder %s27, %s43
      %p45 = scmp.eq.s32.totalorder %s19, 0
      %p46 = por %p44, %p45
      %s47 = ssub.s32 %s13, %s20
      %p48 = scmp.eq.s32.totalorder %s47, 0
      %s50 = sadd.s32 %s49, 1
      %s51 = scalar_select %p48, %s49, %s50
      %p54 = pneg %p48
      %p55 = scmp.eq.s32.totalorder %s13, 1
      %p56 = por %p54, %p55
      %p57 = scmp.ne.s32.totalorder %s49, %s52
      %p58 = scmp.eq.s32.totalorder %s13, 0
      %p59 = por %p57, %p58
      %p60 = scmp.ne.s32.totalorder %s49, %s52
      %p61 = scmp.eq.s32.totalorder %s18, 1
      %p62 = por %p60, %p61
      %p63 = scmp.ne.s32.totalorder %s52, %s53
      %p64 = scmp.eq.s32.totalorder %s18, 0
      %p65 = por %p63, %p64
      %p66 = scmp.ne.s32.totalorder %s52, %s53
      %p67 = scmp.eq.s32.totalorder %s19, 1
      %p68 = por %p66, %p67
      %p70 = scmp.ne.s32.totalorder %s53, %s69
      %p71 = scmp.eq.s32.totalorder %s19, 0
      %p72 = por %p70, %p71
      %s73 = ssub.s32 %s13, %s20
      %p74 = scmp.eq.s32.totalorder %s73, 0
      %s76 = sadd.s32 %s75, 1
      %s77 = scalar_select %p74, %s75, %s76
      %p80 = pneg %p74
      %p81 = scmp.eq.s32.totalorder %s13, 1
      %p82 = por %p80, %p81
      %p83 = scmp.ne.s32.totalorder %s75, %s78
      %p84 = scmp.eq.s32.totalorder %s13, 0
      %p85 = por %p83, %p84
      %p86 = scmp.ne.s32.totalorder %s75, %s78
      %p87 = scmp.eq.s32.totalorder %s18, 1
      %p88 = por %p86, %p87
      %p89 = scmp.ne.s32.totalorder %s78, %s79
      %p90 = scmp.eq.s32.totalorder %s18, 0
      %p91 = por %p89, %p90
      %p92 = scmp.ne.s32.totalorder %s78, %s79
      %p93 = scmp.eq.s32.totalorder %s19, 1
      %p94 = por %p92, %p93
      %p96 = scmp.ne.s32.totalorder %s79, %s95
      %p97 = scmp.eq.s32.totalorder %s19, 0
      %p98 = por %p96, %p97
      %s99 = ssub.s32 %s13, %s20
      %p100 = scmp.eq.s32.totalorder %s99, 0
      %s102 = sadd.s32 %s101, 1
      %s103 = scalar_select %p100, %s101, %s102
      %p106 = pneg %p100
      %p107 = scmp.eq.s32.totalorder %s13, 1
      %p108 = por %p106, %p107
      %p109 = scmp.ne.s32.totalorder %s101, %s104
      %p110 = scmp.eq.s32.totalorder %s13, 0
      %p111 = por %p109, %p110
      %p112 = scmp.ne.s32.totalorder %s101, %s104
      %p113 = scmp.eq.s32.totalorder %s18, 1
      %p114 = por %p112, %p113
      %p115 = scmp.ne.s32.totalorder %s104, %s105
      %p116 = scmp.eq.s32.totalorder %s18, 0
      %p117 = por %p115, %p116
      %p118 = scmp.ne.s32.totalorder %s104, %s105
      %p119 = scmp.eq.s32.totalorder %s19, 1
      %p120 = por %p118, %p119
      %p122 = scmp.ne.s32.totalorder %s105, %s121
      %p123 = scmp.eq.s32.totalorder %s19, 0
      %p124 = por %p122, %p123
      %s125 = ssub.s32 %s13, %s20
      %p126 = scmp.eq.s32.totalorder %s125, 0
      %s128 = sadd.s32 %s127, 1
      %s129 = scalar_select %p126, %s127, %s128
      %p132 = pneg %p126
      %p133 = scmp.eq.s32.totalorder %s13, 1
      %p134 = por %p132, %p133
      %p135 = scmp.ne.s32.totalorder %s127, %s130
      %p136 = scmp.eq.s32.totalorder %s13, 0
      %p137 = por %p135, %p136
      %p138 = scmp.ne.s32.totalorder %s127, %s130
      %p139 = scmp.eq.s32.totalorder %s18, 1
      %p140 = por %p138, %p139
      %p141 = scmp.ne.s32.totalorder %s130, %s131
      %p142 = scmp.eq.s32.totalorder %s18, 0
      %p143 = por %p141, %p142
      %p144 = scmp.ne.s32.totalorder %s130, %s131
      %p145 = scmp.eq.s32.totalorder %s19, 1
      %p146 = por %p144, %p145
      %p148 = scmp.ne.s32.totalorder %s131, %s147
      %p149 = scmp.eq.s32.totalorder %s19, 0
      %p150 = por %p148, %p149
      %p151 = scmp.le.s32.totalorder 1, %s13
      %p152 = scmp.lt.s32.totalorder %s13, 3
      %p153 = pnand %p151, %p152
      %p154 = pneg %p153
      // Predicated region
      $region9: #{tpu_custom_call.1} parent=5 // pred_check
        _
      $region10: #{tpu_custom_call.1} parent=5 // pred_check_branch
        %156 = sbr.rel (%p153) target = $region12
      $region11: #{tpu_custom_call.1} parent=5 // pred_region
        %s157 = ssub.s32 %s13, 1
      $region12: #{tpu_custom_call.1} parent=5 // pred_fallthru
        _
      %p158 = scmp.lt.s32.totalorder %s13, 2
      // Predicated region
      $region13: #{tpu_custom_call.1} parent=5 // pred_check
        %p159 = pneg %p158
      $region14: #{tpu_custom_call.1} parent=5 // pred_check_branch
        %161 = sbr.rel (%p159) target = $region16
      $region15: #{tpu_custom_call.1} parent=5 // pred_region
        // Predicated region
        $region17: #{tpu_custom_call.1} parent=15 // pred_check
          %p162 = pneg %p33
        $region18: #{tpu_custom_call.1} parent=15 // pred_check_branch
          %164 = sbr.rel (%p162) target = $region20
        $region19: #{tpu_custom_call.1} parent=15 // pred_region
          %p165 = scmp.lt.s32.totalorder %s13, 1
          %s166 = scalar_select %p165, %s13, 1
          %s167 = smul.addr %s166, 4
          %s168 = smul.addr %s167, 8
          %s169 = scalar_lea.vmem %s0, %s168
        $region20: #{tpu_custom_call.1} parent=15 // pred_fallthru
          _
        // Predicated region
        $region21: #{tpu_custom_call.1} parent=15 // pred_check
          %p170 = pneg %p59
        $region22: #{tpu_custom_call.1} parent=15 // pred_check_branch
          %172 = sbr.rel (%p170) target = $region24
        $region23: #{tpu_custom_call.1} parent=15 // pred_region
          %p173 = scmp.lt.s32.totalorder %s13, 1
          %s174 = scalar_select %p173, %s13, 1
          %s175 = scalar_lea.vmem %s1, %s174
        $region24: #{tpu_custom_call.1} parent=15 // pred_fallthru
          _
        // Predicated region
        $region25: #{tpu_custom_call.1} parent=15 // pred_check
          %p176 = pneg %p85
        $region26: #{tpu_custom_call.1} parent=15 // pred_check_branch
          %178 = sbr.rel (%p176) target = $region28
        $region27: #{tpu_custom_call.1} parent=15 // pred_region
          %p179 = scmp.lt.s32.totalorder %s13, 1
          %s180 = scalar_select %p179, %s13, 1
          %s181 = smul.addr %s180, 4
          %s182 = smul.addr %s181, 4
          %s183 = scalar_lea.vmem %s2, %s182
        $region28: #{tpu_custom_call.1} parent=15 // pred_fallthru
          _
        // Predicated region
        $region29: #{tpu_custom_call.1} parent=15 // pred_check
          %p184 = pneg %p111
        $region30: #{tpu_custom_call.1} parent=15 // pred_check_branch
          %186 = sbr.rel (%p184) target = $region32
        $region31: #{tpu_custom_call.1} parent=15 // pred_region
          %p187 = scmp.lt.s32.totalorder %s13, 1
          %s188 = scalar_select %p187, %s13, 1
          %s189 = smul.addr %s188, 16
          %s190 = smul.addr %s189, 4
          %s191 = scalar_lea.vmem %s3, %s190
        $region32: #{tpu_custom_call.1} parent=15 // pred_fallthru
          _
      $region16: #{tpu_custom_call.1} parent=5 // pred_fallthru
        _
      %p192 = scmp.le.s32.totalorder 1, %s13
      %p193 = scmp.lt.s32.totalorder %s13, 3
      %p194 = pnand %p192, %p193
      %p195 = pneg %p194
      // Predicated region
      $region33: #{tpu_custom_call.1} parent=5 // pred_check
        _
      $region34: #{tpu_custom_call.1} parent=5 // pred_check_branch
        %197 = sbr.rel (%p194) target = $region36
      $region35: #{tpu_custom_call.1} parent=5 // pred_region
        %s198 = ssub.s32 %s13, 1
        %p199 = scmp.lt.s32.totalorder %s18, 1
        %s200 = scalar_select %p199, %s18, 1
        %s201 = smul.addr %s200, 4
        %s202 = smul.addr %s201, 8
        %s203 = scalar_lea.vmem %s0, %s202
        %p204 = pneg %p39
        %p205 = pneg %p36
        %p206 = scmp.lt.s32.totalorder %s18, 1
        %s207 = scalar_select %p206, %s18, 1
        %s208 = scalar_lea.vmem %s1, %s207
        %p209 = pneg %p65
        %p210 = pneg %p62
        %p211 = scmp.lt.s32.totalorder %s18, 1
        %s212 = scalar_select %p211, %s18, 1
        %s213 = smul.addr %s212, 4
        %s214 = smul.addr %s213, 4
        %s215 = scalar_lea.vmem %s2, %s214
        %p216 = pneg %p91
        %p217 = pneg %p88
        %p218 = scmp.lt.s32.totalorder %s18, 1
        %s219 = scalar_select %p218, %s18, 1
        %s220 = smul.addr %s219, 16
        %s221 = smul.addr %s220, 4
        %s222 = scalar_lea.vmem %s3, %s221
        %p223 = pneg %p117
        %p224 = pneg %p114
        %p225 = pneg %p143
        %p226 = pneg %p140
        %s227 = sand.u32 %s130, 1
        %s228 = scalar_lea.sflag [#allocation3], %s227
        %s229 = sand.u32 %s130, 1
        %s230 = smul.addr %s229, 8
        %s231 = scalar_lea.vmem [#allocation2], %s230
        %p232 = scmp.lt.s32.totalorder %s18, 1
        %s233 = scalar_select %p232, %s18, 1
        %s234 = smul.addr %s233, 4
        %s235 = smul.addr %s234, 8
        %s236 = scalar_lea.vmem %s0, %s235
        %p237 = scmp.lt.s32.totalorder %s18, 1
        %s238 = scalar_select %p237, %s18, 1
        %s239 = scalar_lea.vmem %s1, %s238
        %p240 = scmp.lt.s32.totalorder %s18, 1
        %s241 = scalar_select %p240, %s18, 1
        %s242 = smul.addr %s241, 4
        %s243 = smul.addr %s242, 4
        %s244 = scalar_lea.vmem %s2, %s243
        %p245 = scmp.lt.s32.totalorder %s18, 1
        %s246 = scalar_select %p245, %s18, 1
        %s247 = smul.addr %s246, 16
        %s248 = smul.addr %s247, 4
        %s249 = scalar_lea.vmem %s3, %s248
        %v253 = vld [vmem:[%s244] sm:$0xf]
        %v254 = vld [vmem:[%s244 + $0x4] sm:$0xf]
        %v255 = vld [vmem:[%s244 + $0x8] sm:$0xf]
        %v256 = vld [vmem:[%s244 + $0xc] sm:$0xf]
        %v257 = vld [vmem:[%s249] sm:$0xf]
        %v258 = vld [vmem:[%s249 + $0x4] sm:$0xf]
        %v259 = vld [vmem:[%s249 + $0x8] sm:$0xf]
        %v260 = vld [vmem:[%s249 + $0xc] sm:$0xf]
        %v261 = vld [vmem:[%s249 + $0x10] sm:$0xf]
        %v262 = vld [vmem:[%s249 + $0x14] sm:$0xf]
        %v263 = vld [vmem:[%s249 + $0x18] sm:$0xf]
        %v264 = vld [vmem:[%s249 + $0x1c] sm:$0xf]
        %v265 = vld [vmem:[%s249 + $0x20] sm:$0xf]
        %v266 = vld [vmem:[%s249 + $0x24] sm:$0xf]
        %v267 = vld [vmem:[%s249 + $0x28] sm:$0xf]
        %v268 = vld [vmem:[%s249 + $0x2c] sm:$0xf]
        %v269 = vld [vmem:[%s249 + $0x30] sm:$0xf]
        %v270 = vld [vmem:[%s249 + $0x34] sm:$0xf]
        %v271 = vld [vmem:[%s249 + $0x38] sm:$0xf]
        %v272 = vld [vmem:[%s249 + $0x3c] sm:$0xf]
        %v273 = vld [vmem:[%s239] sm:$0x1]
        %v275 = vlaneseq
        %v276 = vshrl.u32 %v275, 7
        %v277 = vsub.s32 0, %v276
        %v278 = vrot.slane %v273, %v277
        %v284 = vunpack.c.l.b16 %v253
        %v285 = vunpack.c.l.b16 %v254
        %v286 = vunpack.c.l.b16 %v255
        %v287 = vunpack.c.l.b16 %v256
        %v288 = vpack.c.b16 %v285, %v284
        %v289 = vpack.c.b16 %v287, %v286
        %v306 = vunpack.c.l.b16 %v257
        %v307 = vunpack.c.l.b16 %v258
        %v308 = vunpack.c.l.b16 %v259
        %v309 = vunpack.c.l.b16 %v260
        %v310 = vunpack.c.l.b16 %v261
        %v311 = vunpack.c.l.b16 %v262
        %v312 = vunpack.c.l.b16 %v263
        %v313 = vunpack.c.l.b16 %v264
        %v314 = vunpack.c.l.b16 %v265
        %v315 = vunpack.c.l.b16 %v266
        %v316 = vunpack.c.l.b16 %v267
        %v317 = vunpack.c.l.b16 %v268
        %v318 = vunpack.c.l.b16 %v269
        %v319 = vunpack.c.l.b16 %v270
        %v320 = vunpack.c.l.b16 %v271
        %v321 = vunpack.c.l.b16 %v272
        %v322 = vpack.c.b16 %v307, %v306
        %v323 = vpack.c.b16 %v309, %v308
        %v324 = vpack.c.b16 %v311, %v310
        %v325 = vpack.c.b16 %v313, %v312
        %v326 = vpack.c.b16 %v315, %v314
        %v327 = vpack.c.b16 %v317, %v316
        %v328 = vpack.c.b16 %v319, %v318
        %v329 = vpack.c.b16 %v321, %v320
        %vm330 = vcmask 261120
        %v332 = vsel %vm330, %v288, 0
        %v335 = vsel %vm330, %v289, 0
        %v338 = vsel %vm330, %v322, 0
        %v341 = vsel %vm330, %v323, 0
        %v344 = vsel %vm330, %v324, 0
        %v347 = vsel %vm330, %v325, 0
        %v350 = vsel %vm330, %v326, 0
        %v353 = vsel %vm330, %v327, 0
        %v356 = vsel %vm330, %v328, 0
        %v359 = vsel %vm330, %v329, 0
        %361 = vmatprep.subr.bf16.mxu0 0
        %362 = vmatpush1.bf16.xpose.msra.mxu0 %v359
        %363 = vmatprep.subr.bf16.mxu0 0
        %364 = vmatpush1.bf16.xpose.msra.mxu0 %v356
        %365 = vmatprep.subr.bf16.mxu0 0
        %366 = vmatpush1.bf16.xpose.msra.mxu0 %v353
        %367 = vmatprep.subr.bf16.mxu0 0
        %368 = vmatpush1.bf16.xpose.msra.mxu0 %v350
        %369 = vmatprep.subr.bf16.mxu0 0
        %370 = vmatpush1.bf16.xpose.msra.mxu0 %v347
        %371 = vmatprep.subr.bf16.mxu0 0
        %372 = vmatpush1.bf16.xpose.msra.mxu0 %v344
        %373 = vmatprep.subr.bf16.mxu0 0
        %374 = vmatpush1.bf16.xpose.msra.mxu0 %v341
        %375 = vmatprep.subr.bf16.mxu0 0
        %376 = vmatpush1.bf16.xpose.msra.mxu0 %v338
        %377 = vmatprep.subr.bf16.mxu0 0
        %378 = vmatpush2.bf16.xpose.msra.mxu0 0
        %379 = vmatprep.subr.bf16.mxu0 0
        %380 = vmatpush2.bf16.xpose.msra.mxu0 0
        %381 = vmatprep.subr.bf16.mxu0 0
        %382 = vmatpush2.bf16.xpose.msra.mxu0 0
        %383 = vmatprep.subr.bf16.mxu0 0
        %384 = vmatpush2.bf16.xpose.msra.mxu0 0
        %385 = vmatprep.subr.bf16.mxu0 0
        %386 = vmatpush2.bf16.xpose.msra.mxu0 0
        %387 = vmatprep.subr.bf16.mxu0 0
        %388 = vmatpush2.bf16.xpose.msra.mxu0 0
        %389 = vmatprep.subr.bf16.mxu0 0
        %390 = vmatpush2.bf16.xpose.msra.mxu0 0
        %391 = vmatprep.subr.bf16.mxu0 0
        %392 = vmatpush2.bf16.xpose.msra.mxu0 0
        %393 = vmatprep.mubr.bf16.mxu0 0
        %394 = vmatmul.mubr.bf16.gmra.mxu0 %v332
        %v395 = vpop.f32.mrf.mxu0
        %v396 = vadd.f32 %v278, %v395
        %v397 = vpop.f32.mrf.mxu0
        %v398 = vpop.f32.mrf.mxu0
        %v399 = vadd.f32 %v278, %v398
        %v400 = vpop.f32.mrf.mxu0
        %401 = vmatprep.mubr.bf16.mxu0 0
        %402 = vmatmul.mubr.bf16.gmra.mxu0 %v335
        %v403 = vpop.f32.mrf.mxu0
        %v404 = vadd.f32 %v278, %v403
        %v405 = vpop.f32.mrf.mxu0
        %v406 = vpop.f32.mrf.mxu0
        %v407 = vadd.f32 %v278, %v406
        %v408 = vpop.f32.mrf.mxu0
        %409 = vdwg.mxu0
        %v410 = vld [vmem:[%s236] sm:$0xff]
        %v411 = vld [vmem:[%s236 + $0x8] sm:$0xff]
        %v412 = vld [vmem:[%s236 + $0x10] sm:$0xff]
        %v413 = vld [vmem:[%s236 + $0x18] sm:$0xff]
        %415 = vset.pattern.permute.xlu0 0
        %416 = vperm.xlu0 %415, %v410
        %v417 = vpop.permute.xlu0 %416
        %420 = vset.pattern.permute.xlu0 0
        %421 = vperm.xlu0 %420, %v411
        %v422 = vpop.permute.xlu0 %421
        %425 = vset.pattern.permute.xlu0 0
        %426 = vperm.xlu0 %425, %v412
        %v427 = vpop.permute.xlu0 %426
        %430 = vset.pattern.permute.xlu0 0
        %431 = vperm.xlu0 %430, %v413
        %v432 = vpop.permute.xlu0 %431
        %v434 = vadd.f32 %v396, %v417
        %v435 = vadd.f32 %v399, %v422
        %v436 = vadd.f32 %v404, %v427
        %v437 = vadd.f32 %v407, %v432
        %438 = vmax.xlane.f32.xlu0 %v434
        %v439 = vpop.xlane.xlu0 %438
        %440 = vmax.xlane.f32.xlu0 %v435
        %v441 = vpop.xlane.xlu0 %440
        %442 = vmax.xlane.f32.xlu0 %v436
        %v443 = vpop.xlane.xlu0 %442
        %444 = vmax.xlane.f32.xlu0 %v437
        %v445 = vpop.xlane.xlu0 %444
        %v446 = vsub.f32 %v434, %v439
        %v447 = vsub.f32 %v435, %v441
        %v448 = vsub.f32 %v436, %v443
        %v449 = vsub.f32 %v437, %v445
        %v450 = vmul.f32 %v446, 1.442695
        %v451 = vpow.pop %v450
        %v452 = vmul.f32 %v447, 1.442695
        %v453 = vpow.pop %v452
        %v454 = vmul.f32 %v448, 1.442695
        %v455 = vpow.pop %v454
        %v456 = vmul.f32 %v449, 1.442695
        %v457 = vpow.pop %v456
        %458 = vadd.xlane.f32.xlu0 %v451
        %v459 = vpop.xlane.xlu0 %458
        %460 = vadd.xlane.f32.xlu0 %v453
        %v461 = vpop.xlane.xlu0 %460
        %462 = vadd.xlane.f32.xlu0 %v455
        %v463 = vpop.xlane.xlu0 %462
        %464 = vadd.xlane.f32.xlu0 %v457
        %v465 = vpop.xlane.xlu0 %464
        %v466 = vlog2.pop %v459
        %v467 = vmul.f32 %v466, 0.6931472
        %v468 = vlog2.pop %v461
        %v469 = vmul.f32 %v468, 0.6931472
        %v470 = vlog2.pop %v463
        %v471 = vmul.f32 %v470, 0.6931472
        %v472 = vlog2.pop %v465
        %v473 = vmul.f32 %v472, 0.6931472
        %v474 = vadd.f32 %v439, %v467
        %v475 = vadd.f32 %v441, %v469
        %v476 = vadd.f32 %v443, %v471
        %v477 = vadd.f32 %v445, %v473
        %v478 = vmax.f32 %v434, %v435
        %v479 = vmax.f32 %v436, %v437
        %v480 = vmax.f32 %v478, %v479
        %v481 = vrot.slane %v480, 4
        %v482 = vmax.f32 %v480, %v481
        %v483 = vrot.slane %v482, 2
        %v484 = vmax.f32 %v482, %v483
        %v485 = vrot.slane %v484, 1
        %v486 = vmax.f32 %v484, %v485
        %v487 = vsub.f32 %v434, %v486
        %v488 = vsub.f32 %v435, %v486
        %v489 = vsub.f32 %v436, %v486
        %v490 = vsub.f32 %v437, %v486
        %v491 = vmul.f32 %v487, 1.442695
        %v492 = vpow.pop %v491
        %v493 = vmul.f32 %v488, 1.442695
        %v494 = vpow.pop %v493
        %v495 = vmul.f32 %v489, 1.442695
        %v496 = vpow.pop %v495
        %v497 = vmul.f32 %v490, 1.442695
        %v498 = vpow.pop %v497
        %v499 = vadd.f32 %v492, %v494
        %v500 = vadd.f32 %v499, %v496
        %v501 = vadd.f32 %v500, %v498
        %v502 = vrot.slane %v501, 4
        %v503 = vadd.f32 %v501, %v502
        %v504 = vrot.slane %v503, 2
        %v505 = vadd.f32 %v503, %v504
        %v506 = vrot.slane %v505, 1
        %v507 = vadd.f32 %v505, %v506
        %v508 = vlog2.pop %v507
        %v509 = vmul.f32 %v508, 0.6931472
        %v510 = vadd.f32 %v486, %v509
        %v511 = vmax.f32 %v474, %v510
        %v512 = vmax.f32 %v475, %v510
        %v513 = vmax.f32 %v476, %v510
        %v514 = vmax.f32 %v477, %v510
        %v515 = vadd.f32 %v511, -6.9077554
        %v516 = vadd.f32 %v512, -6.9077554
        %v517 = vadd.f32 %v513, -6.9077554
        %v518 = vadd.f32 %v514, -6.9077554
        %vm519 = vcmp.gt.f32.partialorder %v434, %v515
        %vm520 = vcmp.gt.f32.partialorder %v435, %v516
        %vm521 = vcmp.gt.f32.partialorder %v436, %v517
        %vm522 = vcmp.gt.f32.partialorder %v437, %v518
        %vm523 = vmpackc.low %vm520, %vm519
        %vm524 = vmpackc.low %vm522, %vm521
        %vm525 = vmpackc.even %vm524, %vm523
        %v526 = vsel %vm525, 16843009, 0
        %527 = vst [vmem:[%s231] sm:$0xff] %v526
        %s528 = sand.u32 %s130, 1
        %s529 = scalar_lea.sflag [#allocation3], %s528
        %s530 = sand.u32 %s130, 1
        %s531 = smul.addr %s530, 8
        %s532 = scalar_lea.vmem [#allocation2], %s531
        // Predicated region
        $region37: #{tpu_custom_call.1} parent=35 // pred_check
          %p533 = pneg %p140
        $region38: #{tpu_custom_call.1} parent=35 // pred_check_branch
          %535 = sbr.rel (%p533) target = $region40
        $region39: #{tpu_custom_call.1} parent=35 // pred_region
          %s537 = ssub.s32 128, 128
          %538 = vsyncadd %s529, %s537
          %s539 = smul.addr %s18, 128
          %s540 = scalar_lea.hbm %s4, %s539
          %s542 = sshll.u32 %s532, 4
          %s543 = int_to_ptr.vmem [resolvable:$true] %s542
          %545 = dma.vmem_to_hbm [thread:$0]  %s543, 128, %s540, %s529
        $region40: #{tpu_custom_call.1} parent=35 // pred_fallthru
          _
      $region36: #{tpu_custom_call.1} parent=5 // pred_fallthru
        _
      %p546 = scmp.le.s32.totalorder 2, %s13
      // Predicated region
      $region41: #{tpu_custom_call.1} parent=5 // pred_check
        %p547 = pneg %p546
      $region42: #{tpu_custom_call.1} parent=5 // pred_check_branch
        %549 = sbr.rel (%p547) target = $region44
      $region43: #{tpu_custom_call.1} parent=5 // pred_region
        %s550 = ssub.s32 %s13, 2
        // Predicated region
        $region45: #{tpu_custom_call.1} parent=43 // pred_check
          %p551 = pneg %p146
        $region46: #{tpu_custom_call.1} parent=43 // pred_check_branch
          %553 = sbr.rel (%p551) target = $region48
        $region47: #{tpu_custom_call.1} parent=43 // pred_region
          %s554 = sand.u32 %s131, 1
          %s555 = scalar_lea.sflag [#allocation3], %s554
          %s556 = sand.u32 %s131, 1
          %s557 = smul.addr %s556, 8
          %s558 = scalar_lea.vmem [#allocation2], %s557
          %559 = dma.done %s555, 128
        $region48: #{tpu_custom_call.1} parent=43 // pred_fallthru
          _
      $region44: #{tpu_custom_call.1} parent=5 // pred_fallthru
        _
    $region6: #{tpu_custom_call.1} parent=1 // loop_footer
      %s17 = sadd.s32 1, %s13
    $region7: #{tpu_custom_call.1} parent=1 // loop_footer_branch
      %12 = sbr.rel target = $region3
    $region8: #{tpu_custom_call.1} parent=1 // loop_exit
      _
    %560 = vsyncpa [#allocation3], 1
    %s561 = scalar_lea.sflag [#allocation3], 1
    %562 = vsyncpa %s561, 1

</llo_original>
